<compile_context>
chip_gen: v7x
topology: tpu7x:2x2x1
jax: 0.10.0
libtpu: 0.0.40
codegen_flags: <defaults>
</compile_context>

<pallas_src>
import jax
import jax.numpy as jnp
from jax.experimental import pallas as pl
from jax.experimental.pallas import tpu as pltpu


# ----------------------------- Pallas kernel --------------------------------
def _rot_one(x_ref, c_ref, s_ref, o_ref):
    x = x_ref[...].astype(jnp.float32)            # (tS, H*D)
    hd = x.shape[-1]
    axis = x.ndim - 1
    lane = jax.lax.broadcasted_iota(jnp.int32, x.shape, axis)
    is_even = (lane & 1) == 0
    # Pairwise swap of adjacent lanes: even lanes take their right neighbour,
    # odd lanes take their left neighbour.  Rolls run on the XLU slot (free-ish
    # for this mem-bound kernel); roll by hd-1 == roll by -1.
    x_swap = jnp.where(is_even,
                       pltpu.roll(x, hd - 1, axis),
                       pltpu.roll(x, 1, axis))
    out = x * c_ref[...].astype(jnp.float32) + x_swap * s_ref[...].astype(jnp.float32)
    o_ref[...] = out.astype(o_ref.dtype)


def _rope_kernel(xq_ref, xk_ref, cq_ref, sq_ref, ck_ref, sk_ref, oq_ref, ok_ref):
    _rot_one(xq_ref, cq_ref, sq_ref, oq_ref)
    _rot_one(xk_ref, ck_ref, sk_ref, ok_ref)


# ------------------------------ host helpers ---------------------------------
def _expand_tables(cos, sin, n_heads):
    """cos/sin [S, D/2] -> interleaved, sign-folded, head-tiled [S, n_heads*D] (f32).

    cos_i = [c0, c0, c1, c1, ...],  sin_i = [-s0, s0, -s1, s1, ...] so that
      out[2j]   = x[2j]*c_j   + x[2j+1]*(-s_j)
      out[2j+1] = x[2j+1]*c_j + x[2j]  *( s_j)
    """
    S, half = cos.shape
    cos = cos.astype(jnp.float32)
    sin = sin.astype(jnp.float32)
    cos_i = jnp.repeat(cos, 2, axis=-1)
    sin_i = jnp.stack([-sin, sin], axis=-1).reshape(S, 2 * half)
    return jnp.tile(cos_i, (1, n_heads)), jnp.tile(sin_i, (1, n_heads))


def _choose_seq_tile(S, row_bytes, budget_bytes=16 * 1024 * 1024):
    """Largest multiple-of-8 divisor of S whose per-step footprint fits the budget.

    Budget is conservative w.r.t. v7x's 32 MiB scoped-VMEM default (64 MiB physical).
    """
    max_rows = budget_bytes // max(row_bytes, 1)
    if S <= max_rows or max_rows < 8:
        return S
    t = min((max_rows // 8) * 8, (S // 8) * 8)
    while t >= 8:
        if S % t == 0:
            return t
        t -= 8
    return S


# --------------------------- Module forward ---------------------------------
def llama_rotary_forward(xq, xk, cos, sin):
    """Pallas equivalent of PytorchLlamaRotaryModel.forward.

    xq: [B, S, n_heads, D], xk: [B, S, n_kv_heads, D], cos/sin: [S, D//2]
    (real/imag of freqs_cis).  Returns (xq_rot, xk_rot) with input shapes.
    """
    B, S, Hq, D = xq.shape
    Bk, Sk, Hk, Dk = xk.shape
    assert (B, S, D) == (Bk, Sk, Dk) and D % 2 == 0
    hq_d, hk_d = Hq * D, Hk * D

    # Free (contiguous) reshapes to a lane-dense last dim.
    xq_f = xq.reshape(B, S, hq_d)
    xk_f = xk.reshape(B, S, hk_d)

    cq, sq = _expand_tables(cos, sin, Hq)
    ck, sk = _expand_tables(cos, sin, Hk)

    # Per-seq-row VMEM bytes: (q+k) in & out (x dtype) + 4 f32 tables, double-buffered.
    itemsize = jnp.dtype(xq.dtype).itemsize
    row_bytes = 2 * ((2 * itemsize + 8) * (hq_d + hk_d))
    tS = _choose_seq_tile(S, row_bytes)
    grid = (B, S // tS)

    def x_map(b, s):
        return (b, s, 0)

    def t_map(b, s):
        return (s, 0)

    oq_f, ok_f = pl.pallas_call(
        _rope_kernel,
        out_shape=(
            jax.ShapeDtypeStruct((B, S, hq_d), xq.dtype),
            jax.ShapeDtypeStruct((B, S, hk_d), xk.dtype),
        ),
        grid=grid,
        in_specs=[
            pl.BlockSpec((None, tS, hq_d), x_map),   # xq slab
            pl.BlockSpec((None, tS, hk_d), x_map),   # xk slab
            pl.BlockSpec((tS, hq_d), t_map),         # cos (q)
            pl.BlockSpec((tS, hq_d), t_map),         # sin (q, sign-folded)
            pl.BlockSpec((tS, hk_d), t_map),         # cos (k)
            pl.BlockSpec((tS, hk_d), t_map),         # sin (k, sign-folded)
        ],
        out_specs=(
            pl.BlockSpec((None, tS, hq_d), x_map),
            pl.BlockSpec((None, tS, hk_d), x_map),
        ),
        compiler_params=pltpu.CompilerParams(
            dimension_semantics=("parallel", "parallel")),
    )(xq_f, xk_f, cq, sq, ck, sk)

    return oq_f.reshape(B, S, Hq, D), ok_f.reshape(B, S, Hk, D)


# --------------------------- Pure-JAX reference ------------------------------
def _rope_ref(x, cos, sin):
    # x: [B, S, H, D]; complex pairwise rotation, matching torch.view_as_complex path.
    B, S, H, D = x.shape
    xr = x.astype(jnp.float32).reshape(B, S, H, D // 2, 2)
    xe, xo = xr[..., 0], xr[..., 1]
    c = cos[None, :, None, :]
    s = sin[None, :, None, :]
    oe = xe * c - xo * s
    oo = xe * s + xo * c
    return jnp.stack([oe, oo], axis=-1).reshape(B, S, H, D).astype(x.dtype)


def _make_freqs(seq_len, head_dim, theta=10000.0):
    freqs = 1.0 / (theta ** (jnp.arange(0, head_dim, 2, dtype=jnp.float32) / head_dim))
    t = jnp.arange(seq_len, dtype=jnp.float32)
    ang = jnp.outer(t, freqs)  # [S, D/2]
    return jnp.cos(ang), jnp.sin(ang)


if __name__ == "__main__":
    # dim=512, n_heads=8 -> head_dim=64; n_kv_heads=2 (GQA); batch=2, seq=16.
    B, S, n_heads, n_kv_heads, head_dim = 2, 16, 8, 2, 64

    key = jax.random.PRNGKey(0)
    kq, kk = jax.random.split(key)
    xq = jax.random.normal(kq, (B, S, n_heads, head_dim), dtype=jnp.float32)
    xk = jax.random.normal(kk, (B, S, n_kv_heads, head_dim), dtype=jnp.float32)
    cos, sin = _make_freqs(S, head_dim)

    xq_out, xk_out = jax.jit(llama_rotary_forward)(xq, xk, cos, sin)
    jax.block_until_ready((xq_out, xk_out))

    # Correctness check against pure-JAX reference of the PyTorch semantics.
    xq_ref = _rope_ref(xq, cos, sin)
    xk_ref = _rope_ref(xk, cos, sin)
    assert xq_out.shape == xq.shape and xk_out.shape == xk.shape
    assert jnp.allclose(xq_out, xq_ref, atol=1e-5, rtol=1e-5)
    assert jnp.allclose(xk_out, xk_ref, atol=1e-5, rtol=1e-5)

    print("KERNEL_OK")
</pallas_src>

<mosaic_0001>
module attributes {stable_mosaic.version = 11 : i64} {
  func.func @_rope_kernel(%arg0: i32, %arg1: i32, %arg2: memref<1x16x512xf32, #tpu.memory_space<vmem>>, %arg3: memref<1x16x128xf32, #tpu.memory_space<vmem>>, %arg4: memref<16x512xf32, #tpu.memory_space<vmem>>, %arg5: memref<16x512xf32, #tpu.memory_space<vmem>>, %arg6: memref<16x128xf32, #tpu.memory_space<vmem>>, %arg7: memref<16x128xf32, #tpu.memory_space<vmem>>, %arg8: memref<1x16x512xf32, #tpu.memory_space<vmem>>, %arg9: memref<1x16x128xf32, #tpu.memory_space<vmem>>) attributes {dimension_semantics = [#tpu.dimension_semantics<parallel>, #tpu.dimension_semantics<parallel>], iteration_bounds = array<i64: 2, 1>, scalar_prefetch = 0 : i64, scratch_operands = 0 : i64, tpu.core_type = #tpu.core_type<tc>, window_params = [{transform_indices = @transform_0, window_bounds = array<i64: 1, 16, 512>}, {transform_indices = @transform_1, window_bounds = array<i64: 1, 16, 128>}, {transform_indices = @transform_2, window_bounds = array<i64: 16, 512>}, {transform_indices = @transform_3, window_bounds = array<i64: 16, 512>}, {transform_indices = @transform_4, window_bounds = array<i64: 16, 128>}, {transform_indices = @transform_5, window_bounds = array<i64: 16, 128>}, {transform_indices = @transform_6, window_bounds = array<i64: 1, 16, 512>}, {transform_indices = @transform_7, window_bounds = array<i64: 1, 16, 128>}]} {
    %c0 = arith.constant 0 : index
    %c0_0 = arith.constant 0 : index
    %c0_1 = arith.constant 0 : index
    %0 = vector.load %arg2[%c0, %c0_0, %c0_1] : memref<1x16x512xf32, #tpu.memory_space<vmem>>, vector<1x16x512xf32>
    %1 = vector.shape_cast %0 : vector<1x16x512xf32> to vector<16x512xf32>
    %2 = tpu.iota {dimensions = array<i32: 1>} : vector<16x512xi32>
    %c1_i32 = arith.constant 1 : i32
    %3 = vector.broadcast %c1_i32 : i32 to vector<16x512xi32>
    %4 = arith.andi %2, %3 : vector<16x512xi32>
    %c0_i32 = arith.constant 0 : i32
    %5 = vector.broadcast %c0_i32 : i32 to vector<16x512xi32>
    %6 = arith.cmpi eq, %4, %5 : vector<16x512xi32>
    %c511_i32 = arith.constant 511 : i32
    %7 = tpu.dynamic_rotate %1 by %c511_i32 dim 1 : vector<16x512xf32>, i32 -> vector<16x512xf32>
    %c1_i32_2 = arith.constant 1 : i32
    %8 = tpu.dynamic_rotate %1 by %c1_i32_2 dim 1 : vector<16x512xf32>, i32 -> vector<16x512xf32>
    %9 = arith.select %6, %7, %8 : vector<16x512xi1>, vector<16x512xf32>
    %c0_3 = arith.constant 0 : index
    %c0_4 = arith.constant 0 : index
    %10 = vector.load %arg4[%c0_3, %c0_4] : memref<16x512xf32, #tpu.memory_space<vmem>>, vector<16x512xf32>
    %11 = arith.mulf %1, %10 : vector<16x512xf32>
    %c0_5 = arith.constant 0 : index
    %c0_6 = arith.constant 0 : index
    %12 = vector.load %arg5[%c0_5, %c0_6] : memref<16x512xf32, #tpu.memory_space<vmem>>, vector<16x512xf32>
    %13 = arith.mulf %9, %12 : vector<16x512xf32>
    %14 = arith.addf %11, %13 : vector<16x512xf32>
    %c0_7 = arith.constant 0 : index
    %c0_8 = arith.constant 0 : index
    %c0_9 = arith.constant 0 : index
    %15 = vector.load %arg8[%c0_7, %c0_8, %c0_9] : memref<1x16x512xf32, #tpu.memory_space<vmem>>, vector<1x16x512xf32>
    %16 = vector.shape_cast %15 : vector<1x16x512xf32> to vector<16x512xf32>
    %17 = vector.shape_cast %14 : vector<16x512xf32> to vector<1x16x512xf32>
    tpu.vector_store %arg8[%c0_7, %c0_8, %c0_9], %17 {strides = array<i32>} : memref<1x16x512xf32, #tpu.memory_space<vmem>>, vector<1x16x512xf32>,
    %c0_10 = arith.constant 0 : index
    %c0_11 = arith.constant 0 : index
    %c0_12 = arith.constant 0 : index
    %18 = vector.load %arg3[%c0_10, %c0_11, %c0_12] : memref<1x16x128xf32, #tpu.memory_space<vmem>>, vector<1x16x128xf32>
    %19 = vector.shape_cast %18 : vector<1x16x128xf32> to vector<16x128xf32>
    %20 = tpu.iota {dimensions = array<i32: 1>} : vector<16x128xi32>
    %c1_i32_13 = arith.constant 1 : i32
    %21 = vector.broadcast %c1_i32_13 : i32 to vector<16x128xi32>
    %22 = arith.andi %20, %21 : vector<16x128xi32>
    %c0_i32_14 = arith.constant 0 : i32
    %23 = vector.broadcast %c0_i32_14 : i32 to vector<16x128xi32>
    %24 = arith.cmpi eq, %22, %23 : vector<16x128xi32>
    %c127_i32 = arith.constant 127 : i32
    %25 = tpu.dynamic_rotate %19 by %c127_i32 dim 1 : vector<16x128xf32>, i32 -> vector<16x128xf32>
    %c1_i32_15 = arith.constant 1 : i32
    %26 = tpu.dynamic_rotate %19 by %c1_i32_15 dim 1 : vector<16x128xf32>, i32 -> vector<16x128xf32>
    %27 = arith.select %24, %25, %26 : vector<16x128xi1>, vector<16x128xf32>
    %c0_16 = arith.constant 0 : index
    %c0_17 = arith.constant 0 : index
    %28 = vector.load %arg6[%c0_16, %c0_17] : memref<16x128xf32, #tpu.memory_space<vmem>>, vector<16x128xf32>
    %29 = arith.mulf %19, %28 : vector<16x128xf32>
    %c0_18 = arith.constant 0 : index
    %c0_19 = arith.constant 0 : index
    %30 = vector.load %arg7[%c0_18, %c0_19] : memref<16x128xf32, #tpu.memory_space<vmem>>, vector<16x128xf32>
    %31 = arith.mulf %27, %30 : vector<16x128xf32>
    %32 = arith.addf %29, %31 : vector<16x128xf32>
    %c0_20 = arith.constant 0 : index
    %c0_21 = arith.constant 0 : index
    %c0_22 = arith.constant 0 : index
    %33 = vector.load %arg9[%c0_20, %c0_21, %c0_22] : memref<1x16x128xf32, #tpu.memory_space<vmem>>, vector<1x16x128xf32>
    %34 = vector.shape_cast %33 : vector<1x16x128xf32> to vector<16x128xf32>
    %35 = vector.shape_cast %32 : vector<16x128xf32> to vector<1x16x128xf32>
    tpu.vector_store %arg9[%c0_20, %c0_21, %c0_22], %35 {strides = array<i32>} : memref<1x16x128xf32, #tpu.memory_space<vmem>>, vector<1x16x128xf32>,
    return
  }
  func.func @transform_0(%arg0: i32, %arg1: i32) -> (i32, i32, i32) {
    %c0_i32 = arith.constant 0 : i32
    %c0_i32_0 = arith.constant 0 : i32
    return %arg0, %arg1, %c0_i32 : i32, i32, i32
  }
  func.func @transform_1(%arg0: i32, %arg1: i32) -> (i32, i32, i32) {
    %c0_i32 = arith.constant 0 : i32
    %c0_i32_0 = arith.constant 0 : i32
    return %arg0, %arg1, %c0_i32 : i32, i32, i32
  }
  func.func @transform_2(%arg0: i32, %arg1: i32) -> (i32, i32) {
    %c0_i32 = arith.constant 0 : i32
    %c0_i32_0 = arith.constant 0 : i32
    return %arg1, %c0_i32 : i32, i32
  }
  func.func @transform_3(%arg0: i32, %arg1: i32) -> (i32, i32) {
    %c0_i32 = arith.constant 0 : i32
    %c0_i32_0 = arith.constant 0 : i32
    return %arg1, %c0_i32 : i32, i32
  }
  func.func @transform_4(%arg0: i32, %arg1: i32) -> (i32, i32) {
    %c0_i32 = arith.constant 0 : i32
    %c0_i32_0 = arith.constant 0 : i32
    return %arg1, %c0_i32 : i32, i32
  }
  func.func @transform_5(%arg0: i32, %arg1: i32) -> (i32, i32) {
    %c0_i32 = arith.constant 0 : i32
    %c0_i32_0 = arith.constant 0 : i32
    return %arg1, %c0_i32 : i32, i32
  }
  func.func @transform_6(%arg0: i32, %arg1: i32) -> (i32, i32, i32) {
    %c0_i32 = arith.constant 0 : i32
    %c0_i32_0 = arith.constant 0 : i32
    return %arg0, %arg1, %c0_i32 : i32, i32, i32
  }
  func.func @transform_7(%arg0: i32, %arg1: i32) -> (i32, i32, i32) {
    %c0_i32 = arith.constant 0 : i32
    %c0_i32_0 = arith.constant 0 : i32
    return %arg0, %arg1, %c0_i32 : i32, i32, i32
  }
}

</mosaic_0001>

<llo_original>
// kernel: tile.31
$region0: #{tile.31}
  %s0 = inlined_call_operand.vmem [shape: f32[16,2,64], index: 0, kind: input, shape index: {}]
  %s1 = inlined_call_operand.vmem [shape: f32[16,128], index: 1, kind: output, shape index: {}]
  $region1: #{tile.31} parent=0
    #allocation0 [shape = 'u8[65536]{0}', space=vmem, size = 0x10000, scoped, tag = 'scoped mem for input reshape']
    %s3 = sshllo.u32 0, 2
    %s4 = smul.addr 2, 15
    %s5 = scalar_lea.vmem %s0, %s4
    %v6 = vld [vmem:[%s5] sm:%s3]
    %s7 = scalar_lea.vmem [#allocation0], 120
    %8 = vst [vmem:[%s7] sm:%s3] %v6
    %s9 = smul.addr 2, 14
    %s10 = scalar_lea.vmem %s0, %s9
    %v11 = vld [vmem:[%s10] sm:%s3]
    %s12 = scalar_lea.vmem [#allocation0], 112
    %13 = vst [vmem:[%s12] sm:%s3] %v11
    %s14 = smul.addr 2, 13
    %s15 = scalar_lea.vmem %s0, %s14
    %v16 = vld [vmem:[%s15] sm:%s3]
    %s17 = scalar_lea.vmem [#allocation0], 104
    %18 = vst [vmem:[%s17] sm:%s3] %v16
    %s19 = smul.addr 2, 12
    %s20 = scalar_lea.vmem %s0, %s19
    %v21 = vld [vmem:[%s20] sm:%s3]
    %s22 = scalar_lea.vmem [#allocation0], 96
    %23 = vst [vmem:[%s22] sm:%s3] %v21
    %s24 = smul.addr 2, 11
    %s25 = scalar_lea.vmem %s0, %s24
    %v26 = vld [vmem:[%s25] sm:%s3]
    %s27 = scalar_lea.vmem [#allocation0], 88
    %28 = vst [vmem:[%s27] sm:%s3] %v26
    %s29 = smul.addr 2, 10
    %s30 = scalar_lea.vmem %s0, %s29
    %v31 = vld [vmem:[%s30] sm:%s3]
    %s32 = scalar_lea.vmem [#allocation0], 80
    %33 = vst [vmem:[%s32] sm:%s3] %v31
    %s34 = smul.addr 2, 9
    %s35 = scalar_lea.vmem %s0, %s34
    %v36 = vld [vmem:[%s35] sm:%s3]
    %s37 = scalar_lea.vmem [#allocation0], 72
    %38 = vst [vmem:[%s37] sm:%s3] %v36
    %s39 = smul.addr 2, 8
    %s40 = scalar_lea.vmem %s0, %s39
    %v41 = vld [vmem:[%s40] sm:%s3]
    %s42 = scalar_lea.vmem [#allocation0], 64
    %43 = vst [vmem:[%s42] sm:%s3] %v41
    %s44 = smul.addr 2, 7
    %s45 = scalar_lea.vmem %s0, %s44
    %v46 = vld [vmem:[%s45] sm:%s3]
    %s47 = scalar_lea.vmem [#allocation0], 56
    %48 = vst [vmem:[%s47] sm:%s3] %v46
    %s49 = smul.addr 2, 6
    %s50 = scalar_lea.vmem %s0, %s49
    %v51 = vld [vmem:[%s50] sm:%s3]
    %s52 = scalar_lea.vmem [#allocation0], 48
    %53 = vst [vmem:[%s52] sm:%s3] %v51
    %s54 = smul.addr 2, 5
    %s55 = scalar_lea.vmem %s0, %s54
    %v56 = vld [vmem:[%s55] sm:%s3]
    %s57 = scalar_lea.vmem [#allocation0], 40
    %58 = vst [vmem:[%s57] sm:%s3] %v56
    %s59 = smul.addr 2, 4
    %s60 = scalar_lea.vmem %s0, %s59
    %v61 = vld [vmem:[%s60] sm:%s3]
    %s62 = scalar_lea.vmem [#allocation0], 32
    %63 = vst [vmem:[%s62] sm:%s3] %v61
    %s64 = smul.addr 2, 3
    %s65 = scalar_lea.vmem %s0, %s64
    %v66 = vld [vmem:[%s65] sm:%s3]
    %s67 = scalar_lea.vmem [#allocation0], 24
    %68 = vst [vmem:[%s67] sm:%s3] %v66
    %s69 = smul.addr 2, 2
    %s70 = scalar_lea.vmem %s0, %s69
    %v71 = vld [vmem:[%s70] sm:%s3]
    %s72 = scalar_lea.vmem [#allocation0], 16
    %73 = vst [vmem:[%s72] sm:%s3] %v71
    %s74 = scalar_lea.vmem %s0, 2
    %v75 = vld [vmem:[%s74] sm:%s3]
    %s76 = scalar_lea.vmem [#allocation0], 8
    %77 = vst [vmem:[%s76] sm:%s3] %v75
    %v78 = vld [vmem:[%s0] sm:%s3]
    %79 = vst [vmem:[#allocation0] sm:%s3] %v78
    %v80 = vld [vmem:[#allocation0] ss:$8 sm:$0xf]
    %v81 = vld [vmem:[#allocation0] ss:$8 sm:$0xf0]
    %vm82 = vcmask 1047556
    %v83 = vsel %vm82, %v81, %v80
    %vm84 = vcmask 523264
    %85 = vst.msk [vmem:[%s1] sm:$0xff] %vm84, %v83
    %s86 = scalar_lea.vmem [#allocation0], 64
    %v87 = vld [vmem:[%s86] ss:$8 sm:$0xf]
    %s88 = scalar_lea.vmem [#allocation0], 64
    %v89 = vld [vmem:[%s88] ss:$8 sm:$0xf0]
    %vm90 = vcmask 1047556
    %v91 = vsel %vm90, %v89, %v87
    %vm92 = vcmask 523264
    %s93 = scalar_lea.vmem %s1, 8
    %94 = vst.msk [vmem:[%s93] sm:$0xff] %vm92, %v91
    %s95 = scalar_lea.vmem [#allocation0], 1
    %v96 = vld [vmem:[%s95] ss:$8 sm:$0xf]
    %s97 = scalar_lea.vmem [#allocation0], 1
    %v98 = vld [vmem:[%s97] ss:$8 sm:$0xf0]
    %vm99 = vcmask 1047556
    %v100 = vsel %vm99, %v98, %v96
    %101 = vrot.lane.b32.xlu0 %v100, 64
    %v102 = vpop.permute.xlu0 %101
    %vm103 = vcmask 1048064
    %104 = vst.msk [vmem:[%s1] sm:$0xff] %vm103, %v102
    %s105 = scalar_lea.vmem [#allocation0], 65
    %v106 = vld [vmem:[%s105] ss:$8 sm:$0xf]
    %s107 = scalar_lea.vmem [#allocation0], 65
    %v108 = vld [vmem:[%s107] ss:$8 sm:$0xf0]
    %vm109 = vcmask 1047556
    %v110 = vsel %vm109, %v108, %v106
    %111 = vrot.lane.b32.xlu0 %v110, 64
    %v112 = vpop.permute.xlu0 %111
    %vm113 = vcmask 1048064
    %s114 = scalar_lea.vmem %s1, 8
    %115 = vst.msk [vmem:[%s114] sm:$0xff] %vm113, %v112

// kernel: tile.19
$region0: #{tile.19}
  %s0 = inlined_call_operand.vmem [shape: f32[16,8,64], index: 0, kind: input, shape index: {}]
  %s1 = inlined_call_operand.vmem [shape: f32[16,512], index: 1, kind: output, shape index: {}]
  %v2 = vld [vmem:[%s0] ss:$2 sm:$0xff]
  %vm3 = vcmask 523264
  %4 = vst.msk [vmem:[%s1] ss:$8 sm:$0xf] %vm3, %v2
  %s5 = scalar_lea.vmem %s1, 4294967265
  %6 = vst.msk [vmem:[%s5] ss:$8 sm:$0xf0] %vm3, %v2
  %s7 = scalar_lea.vmem %s0, 16
  %v8 = vld [vmem:[%s7] ss:$2 sm:$0xff]
  %vm9 = vcmask 523264
  %s10 = scalar_lea.vmem %s1, 2
  %11 = vst.msk [vmem:[%s10] ss:$8 sm:$0xf] %vm9, %v8
  %s12 = scalar_lea.vmem %s1, 4294967267
  %13 = vst.msk [vmem:[%s12] ss:$8 sm:$0xf0] %vm9, %v8
  %s14 = scalar_lea.vmem %s0, 32
  %v15 = vld [vmem:[%s14] ss:$2 sm:$0xff]
  %vm16 = vcmask 523264
  %s17 = scalar_lea.vmem %s1, 4
  %18 = vst.msk [vmem:[%s17] ss:$8 sm:$0xf] %vm16, %v15
  %s19 = scalar_lea.vmem %s1, 4294967269
  %20 = vst.msk [vmem:[%s19] ss:$8 sm:$0xf0] %vm16, %v15
  %s21 = scalar_lea.vmem %s0, 48
  %v22 = vld [vmem:[%s21] ss:$2 sm:$0xff]
  %vm23 = vcmask 523264
  %s24 = scalar_lea.vmem %s1, 6
  %25 = vst.msk [vmem:[%s24] ss:$8 sm:$0xf] %vm23, %v22
  %s26 = scalar_lea.vmem %s1, 4294967271
  %27 = vst.msk [vmem:[%s26] ss:$8 sm:$0xf0] %vm23, %v22
  %s28 = scalar_lea.vmem %s0, 64
  %v29 = vld [vmem:[%s28] ss:$2 sm:$0xff]
  %vm30 = vcmask 523264
  %s31 = scalar_lea.vmem %s1, 32
  %32 = vst.msk [vmem:[%s31] ss:$8 sm:$0xf] %vm30, %v29
  %s33 = scalar_lea.vmem %s1, 1
  %34 = vst.msk [vmem:[%s33] ss:$8 sm:$0xf0] %vm30, %v29
  %s35 = scalar_lea.vmem %s0, 80
  %v36 = vld [vmem:[%s35] ss:$2 sm:$0xff]
  %vm37 = vcmask 523264
  %s38 = scalar_lea.vmem %s1, 34
  %39 = vst.msk [vmem:[%s38] ss:$8 sm:$0xf] %vm37, %v36
  %s40 = scalar_lea.vmem %s1, 3
  %41 = vst.msk [vmem:[%s40] ss:$8 sm:$0xf0] %vm37, %v36
  %s42 = scalar_lea.vmem %s0, 96
  %v43 = vld [vmem:[%s42] ss:$2 sm:$0xff]
  %vm44 = vcmask 523264
  %s45 = scalar_lea.vmem %s1, 36
  %46 = vst.msk [vmem:[%s45] ss:$8 sm:$0xf] %vm44, %v43
  %s47 = scalar_lea.vmem %s1, 5
  %48 = vst.msk [vmem:[%s47] ss:$8 sm:$0xf0] %vm44, %v43
  %s49 = scalar_lea.vmem %s0, 112
  %v50 = vld [vmem:[%s49] ss:$2 sm:$0xff]
  %vm51 = vcmask 523264
  %s52 = scalar_lea.vmem %s1, 38
  %53 = vst.msk [vmem:[%s52] ss:$8 sm:$0xf] %vm51, %v50
  %s54 = scalar_lea.vmem %s1, 7
  %55 = vst.msk [vmem:[%s54] ss:$8 sm:$0xf0] %vm51, %v50
  %s56 = scalar_lea.vmem %s0, 1
  %v57 = vld [vmem:[%s56] ss:$8 sm:$0xf]
  %s58 = scalar_lea.vmem %s0, 1
  %v59 = vld [vmem:[%s58] ss:$8 sm:$0xf0]
  %vm60 = vcmask 1047556
  %v61 = vsel %vm60, %v59, %v57
  %62 = vrot.lane.b32.xlu0 %v61, 64
  %v63 = vpop.permute.xlu0 %62
  %vm64 = vcmask 1048064
  %65 = vst.msk [vmem:[%s1] sm:$0xff] %vm64, %v63
  %s66 = scalar_lea.vmem %s0, 65
  %v67 = vld [vmem:[%s66] ss:$8 sm:$0xf]
  %s68 = scalar_lea.vmem %s0, 65
  %v69 = vld [vmem:[%s68] ss:$8 sm:$0xf0]
  %vm70 = vcmask 1047556
  %v71 = vsel %vm70, %v69, %v67
  %72 = vrot.lane.b32.xlu0 %v71, 64
  %v73 = vpop.permute.xlu0 %72
  %vm74 = vcmask 1048064
  %s75 = scalar_lea.vmem %s1, 32
  %76 = vst.msk [vmem:[%s75] sm:$0xff] %vm74, %v73
  %s77 = scalar_lea.vmem %s0, 3
  %v78 = vld [vmem:[%s77] ss:$8 sm:$0xf]
  %s79 = scalar_lea.vmem %s0, 3
  %v80 = vld [vmem:[%s79] ss:$8 sm:$0xf0]
  %vm81 = vcmask 1047556
  %v82 = vsel %vm81, %v80, %v78
  %83 = vrot.lane.b32.xlu0 %v82, 64
  %v84 = vpop.permute.xlu0 %83
  %vm85 = vcmask 1048064
  %s86 = scalar_lea.vmem %s1, 8
  %87 = vst.msk [vmem:[%s86] sm:$0xff] %vm85, %v84
  %s88 = scalar_lea.vmem %s0, 67
  %v89 = vld [vmem:[%s88] ss:$8 sm:$0xf]
  %s90 = scalar_lea.vmem %s0, 67
  %v91 = vld [vmem:[%s90] ss:$8 sm:$0xf0]
  %vm92 = vcmask 1047556
  %v93 = vsel %vm92, %v91, %v89
  %94 = vrot.lane.b32.xlu0 %v93, 64
  %v95 = vpop.permute.xlu0 %94
  %vm96 = vcmask 1048064
  %s97 = scalar_lea.vmem %s1, 40
  %98 = vst.msk [vmem:[%s97] sm:$0xff] %vm96, %v95
  %s99 = scalar_lea.vmem %s0, 5
  %v100 = vld [vmem:[%s99] ss:$8 sm:$0xf]
  %s101 = scalar_lea.vmem %s0, 5
  %v102 = vld [vmem:[%s101] ss:$8 sm:$0xf0]
  %vm103 = vcmask 1047556
  %v104 = vsel %vm103, %v102, %v100
  %105 = vrot.lane.b32.xlu0 %v104, 64
  %v106 = vpop.permute.xlu0 %105
  %vm107 = vcmask 1048064
  %s108 = scalar_lea.vmem %s1, 16
  %109 = vst.msk [vmem:[%s108] sm:$0xff] %vm107, %v106
  %s110 = scalar_lea.vmem %s0, 69
  %v111 = vld [vmem:[%s110] ss:$8 sm:$0xf]
  %s112 = scalar_lea.vmem %s0, 69
  %v113 = vld [vmem:[%s112] ss:$8 sm:$0xf0]
  %vm114 = vcmask 1047556
  %v115 = vsel %vm114, %v113, %v111
  %116 = vrot.lane.b32.xlu0 %v115, 64
  %v117 = vpop.permute.xlu0 %116
  %vm118 = vcmask 1048064
  %s119 = scalar_lea.vmem %s1, 48
  %120 = vst.msk [vmem:[%s119] sm:$0xff] %vm118, %v117
  %s121 = scalar_lea.vmem %s0, 7
  %v122 = vld [vmem:[%s121] ss:$8 sm:$0xf]
  %s123 = scalar_lea.vmem %s0, 7
  %v124 = vld [vmem:[%s123] ss:$8 sm:$0xf0]
  %vm125 = vcmask 1047556
  %v126 = vsel %vm125, %v124, %v122
  %127 = vrot.lane.b32.xlu0 %v126, 64
  %v128 = vpop.permute.xlu0 %127
  %vm129 = vcmask 1048064
  %s130 = scalar_lea.vmem %s1, 24
  %131 = vst.msk [vmem:[%s130] sm:$0xff] %vm129, %v128
  %s132 = scalar_lea.vmem %s0, 71
  %v133 = vld [vmem:[%s132] ss:$8 sm:$0xf]
  %s134 = scalar_lea.vmem %s0, 71
  %v135 = vld [vmem:[%s134] ss:$8 sm:$0xf0]
  %vm136 = vcmask 1047556
  %v137 = vsel %vm136, %v135, %v133
  %138 = vrot.lane.b32.xlu0 %v137, 64
  %v139 = vpop.permute.xlu0 %138
  %vm140 = vcmask 1048064
  %s141 = scalar_lea.vmem %s1, 56
  %142 = vst.msk [vmem:[%s141] sm:$0xff] %vm140, %v139

// kernel: llama_rotary_forward.1
$region0: #{llama_rotary_forward.1}
  #allocation0 [shape = 'u32[]', space=smem, size = 0x4, offset = 0x4, fixed_abs, tag = 'smem constant byte address 0x4 - core index']
  #allocation1 [shape = 'u32[144,128]{1,0:T(1,128)}', space=vmem, size = 0x12000, scoped, tag = 'internal scratch']
  %s0 = inlined_call_operand.vmem [shape: f32[2,16,512], index: 0, kind: input, shape index: {}]
  %s1 = inlined_call_operand.vmem [shape: f32[2,16,128], index: 1, kind: input, shape index: {}]
  %s2 = inlined_call_operand.vmem [shape: f32[16,512], index: 2, kind: input, shape index: {}]
  %s3 = inlined_call_operand.vmem [shape: f32[16,512], index: 3, kind: input, shape index: {}]
  %s4 = inlined_call_operand.vmem [shape: f32[16,128], index: 4, kind: input, shape index: {}]
  %s5 = inlined_call_operand.vmem [shape: f32[16,128], index: 5, kind: input, shape index: {}]
  %s6 = inlined_call_operand.vmem [shape: f32[2,16,512], index: 6, kind: output, shape index: {0}]
  %s7 = inlined_call_operand.vmem [shape: f32[2,16,128], index: 7, kind: output, shape index: {1}]
  %8 = xla_tuple %s6, %s7
  %s9 = sld [smem:[#allocation0]]
  $region65: #{llama_rotary_forward.1} parent=0
    _
  %s11 = ssub.s32 1, %s9
  %s12 = scalar_select 0, %s11, %s9
  loop: start=0, step=1, limit=4
  $region2: #{llama_rotary_forward.1} parent=0 // loop_pre_header
    _
  $region3: #{llama_rotary_forward.1} parent=0 // loop_header
    %s14 = sphi 0, %s18
    %p15 = scmp.ge.s32.totalorder %s14, 4
    %s21 = sphi 0, %s33
    %s22 = sphi 0, %s29
    %s23 = sphi 0, %s21
    %s24 = sphi 0, %s22
    %s25 = sphi 0, %s23
    %s26 = sphi 0, %s24
    %s38 = sphi 0, %s40
    %s41 = sphi 0, %s38
    %s42 = sphi 0, %s41
    %s58 = sphi 0, %s42
    %s66 = sphi 0, %s68
    %s69 = sphi 0, %s66
    %s70 = sphi 0, %s69
    %s86 = sphi 0, %s70
    %s92 = sphi 0, %s94
    %s95 = sphi 0, %s92
    %s96 = sphi 0, %s95
    %s112 = sphi 0, %s96
    %s118 = sphi 0, %s120
    %s121 = sphi 0, %s118
    %s122 = sphi 0, %s121
    %s138 = sphi 0, %s122
    %s144 = sphi 0, %s146
    %s147 = sphi 0, %s144
    %s148 = sphi 0, %s147
    %s164 = sphi 0, %s148
    %s170 = sphi 0, %s172
    %s173 = sphi 0, %s170
    %s174 = sphi 0, %s173
    %s190 = sphi 0, %s174
    %s198 = sphi 0, %s200
    %s201 = sphi 0, %s198
    %s202 = sphi 0, %s201
    %s218 = sphi 0, %s202
    %s226 = sphi 0, %s228
    %s229 = sphi 0, %s226
    %s230 = sphi 0, %s229
    %s246 = sphi 0, %s230
  $region4: #{llama_rotary_forward.1} parent=0 // loop_header_branch
    %17 = sbr.rel (%p15) target = $region8
  $region5: #{llama_rotary_forward.1} parent=0 // loop_body
    %s19 = ssub.s32 %s14, 1
    %s20 = ssub.s32 %s14, 2
    %s27 = sadd.s32 1, %s22
    %p28 = scmp.ge.s32.totalorder %s27, 1
    %s29 = scalar_select %p28, 0, %s27
    %s30 = sadd.s32 1, %s21
    %s31 = scalar_select %p28, %s30, %s21
    %p32 = scmp.ge.s32.totalorder %s31, 2
    %s33 = scalar_select %p32, 0, %s31
    %s34 = ssub.s32 %s21, %s33
    %s35 = ssub.s32 %s22, %s29
    %s36 = sor.u32 %s34, %s35
    %p37 = scmp.eq.s32.totalorder %s36, 0
    %s39 = sadd.s32 %s38, 1
    %s40 = scalar_select %p37, %s38, %s39
    %p43 = pneg %p37
    %p44 = scmp.eq.s32.totalorder %s14, 1
    %p45 = por %p43, %p44
    %p46 = scmp.ne.s32.totalorder %s38, %s41
    %p47 = scmp.eq.s32.totalorder %s14, 0
    %p48 = por %p46, %p47
    %p49 = scmp.ne.s32.totalorder %s38, %s41
    %p50 = scmp.eq.s32.totalorder %s19, 1
    %p51 = por %p49, %p50
    %p52 = scmp.ne.s32.totalorder %s41, %s42
    %p53 = scmp.eq.s32.totalorder %s19, 0
    %p54 = por %p52, %p53
    %p55 = scmp.ne.s32.totalorder %s41, %s42
    %p56 = scmp.eq.s32.totalorder %s20, 1
    %p57 = por %p55, %p56
    %p59 = scmp.ne.s32.totalorder %s42, %s58
    %p60 = scmp.eq.s32.totalorder %s20, 0
    %p61 = por %p59, %p60
    %s62 = ssub.s32 %s21, %s33
    %s63 = ssub.s32 %s22, %s29
    %s64 = sor.u32 %s62, %s63
    %p65 = scmp.eq.s32.totalorder %s64, 0
    %s67 = sadd.s32 %s66, 1
    %s68 = scalar_select %p65, %s66, %s67
    %p71 = pneg %p65
    %p72 = scmp.eq.s32.totalorder %s14, 1
    %p73 = por %p71, %p72
    %p74 = scmp.ne.s32.totalorder %s66, %s69
    %p75 = scmp.eq.s32.totalorder %s14, 0
    %p76 = por %p74, %p75
    %p77 = scmp.ne.s32.totalorder %s66, %s69
    %p78 = scmp.eq.s32.totalorder %s19, 1
    %p79 = por %p77, %p78
    %p80 = scmp.ne.s32.totalorder %s69, %s70
    %p81 = scmp.eq.s32.totalorder %s19, 0
    %p82 = por %p80, %p81
    %p83 = scmp.ne.s32.totalorder %s69, %s70
    %p84 = scmp.eq.s32.totalorder %s20, 1
    %p85 = por %p83, %p84
    %p87 = scmp.ne.s32.totalorder %s70, %s86
    %p88 = scmp.eq.s32.totalorder %s20, 0
    %p89 = por %p87, %p88
    %s90 = ssub.s32 %s22, %s29
    %p91 = scmp.eq.s32.totalorder %s90, 0
    %s93 = sadd.s32 %s92, 1
    %s94 = scalar_select %p91, %s92, %s93
    %p97 = pneg %p91
    %p98 = scmp.eq.s32.totalorder %s14, 1
    %p99 = por %p97, %p98
    %p100 = scmp.ne.s32.totalorder %s92, %s95
    %p101 = scmp.eq.s32.totalorder %s14, 0
    %p102 = por %p100, %p101
    %p103 = scmp.ne.s32.totalorder %s92, %s95
    %p104 = scmp.eq.s32.totalorder %s19, 1
    %p105 = por %p103, %p104
    %p106 = scmp.ne.s32.totalorder %s95, %s96
    %p107 = scmp.eq.s32.totalorder %s19, 0
    %p108 = por %p106, %p107
    %p109 = scmp.ne.s32.totalorder %s95, %s96
    %p110 = scmp.eq.s32.totalorder %s20, 1
    %p111 = por %p109, %p110
    %p113 = scmp.ne.s32.totalorder %s96, %s112
    %p114 = scmp.eq.s32.totalorder %s20, 0
    %p115 = por %p113, %p114
    %s116 = ssub.s32 %s22, %s29
    %p117 = scmp.eq.s32.totalorder %s116, 0
    %s119 = sadd.s32 %s118, 1
    %s120 = scalar_select %p117, %s118, %s119
    %p123 = pneg %p117
    %p124 = scmp.eq.s32.totalorder %s14, 1
    %p125 = por %p123, %p124
    %p126 = scmp.ne.s32.totalorder %s118, %s121
    %p127 = scmp.eq.s32.totalorder %s14, 0
    %p128 = por %p126, %p127
    %p129 = scmp.ne.s32.totalorder %s118, %s121
    %p130 = scmp.eq.s32.totalorder %s19, 1
    %p131 = por %p129, %p130
    %p132 = scmp.ne.s32.totalorder %s121, %s122
    %p133 = scmp.eq.s32.totalorder %s19, 0
    %p134 = por %p132, %p133
    %p135 = scmp.ne.s32.totalorder %s121, %s122
    %p136 = scmp.eq.s32.totalorder %s20, 1
    %p137 = por %p135, %p136
    %p139 = scmp.ne.s32.totalorder %s122, %s138
    %p140 = scmp.eq.s32.totalorder %s20, 0
    %p141 = por %p139, %p140
    %s142 = ssub.s32 %s22, %s29
    %p143 = scmp.eq.s32.totalorder %s142, 0
    %s145 = sadd.s32 %s144, 1
    %s146 = scalar_select %p143, %s144, %s145
    %p149 = pneg %p143
    %p150 = scmp.eq.s32.totalorder %s14, 1
    %p151 = por %p149, %p150
    %p152 = scmp.ne.s32.totalorder %s144, %s147
    %p153 = scmp.eq.s32.totalorder %s14, 0
    %p154 = por %p152, %p153
    %p155 = scmp.ne.s32.totalorder %s144, %s147
    %p156 = scmp.eq.s32.totalorder %s19, 1
    %p157 = por %p155, %p156
    %p158 = scmp.ne.s32.totalorder %s147, %s148
    %p159 = scmp.eq.s32.totalorder %s19, 0
    %p160 = por %p158, %p159
    %p161 = scmp.ne.s32.totalorder %s147, %s148
    %p162 = scmp.eq.s32.totalorder %s20, 1
    %p163 = por %p161, %p162
    %p165 = scmp.ne.s32.totalorder %s148, %s164
    %p166 = scmp.eq.s32.totalorder %s20, 0
    %p167 = por %p165, %p166
    %s168 = ssub.s32 %s22, %s29
    %p169 = scmp.eq.s32.totalorder %s168, 0
    %s171 = sadd.s32 %s170, 1
    %s172 = scalar_select %p169, %s170, %s171
    %p175 = pneg %p169
    %p176 = scmp.eq.s32.totalorder %s14, 1
    %p177 = por %p175, %p176
    %p178 = scmp.ne.s32.totalorder %s170, %s173
    %p179 = scmp.eq.s32.totalorder %s14, 0
    %p180 = por %p178, %p179
    %p181 = scmp.ne.s32.totalorder %s170, %s173
    %p182 = scmp.eq.s32.totalorder %s19, 1
    %p183 = por %p181, %p182
    %p184 = scmp.ne.s32.totalorder %s173, %s174
    %p185 = scmp.eq.s32.totalorder %s19, 0
    %p186 = por %p184, %p185
    %p187 = scmp.ne.s32.totalorder %s173, %s174
    %p188 = scmp.eq.s32.totalorder %s20, 1
    %p189 = por %p187, %p188
    %p191 = scmp.ne.s32.totalorder %s174, %s190
    %p192 = scmp.eq.s32.totalorder %s20, 0
    %p193 = por %p191, %p192
    %s194 = ssub.s32 %s21, %s33
    %s195 = ssub.s32 %s22, %s29
    %s196 = sor.u32 %s194, %s195
    %p197 = scmp.eq.s32.totalorder %s196, 0
    %s199 = sadd.s32 %s198, 1
    %s200 = scalar_select %p197, %s198, %s199
    %p203 = pneg %p197
    %p204 = scmp.eq.s32.totalorder %s14, 1
    %p205 = por %p203, %p204
    %p206 = scmp.ne.s32.totalorder %s198, %s201
    %p207 = scmp.eq.s32.totalorder %s14, 0
    %p208 = por %p206, %p207
    %p209 = scmp.ne.s32.totalorder %s198, %s201
    %p210 = scmp.eq.s32.totalorder %s19, 1
    %p211 = por %p209, %p210
    %p212 = scmp.ne.s32.totalorder %s201, %s202
    %p213 = scmp.eq.s32.totalorder %s19, 0
    %p214 = por %p212, %p213
    %p215 = scmp.ne.s32.totalorder %s201, %s202
    %p216 = scmp.eq.s32.totalorder %s20, 1
    %p217 = por %p215, %p216
    %p219 = scmp.ne.s32.totalorder %s202, %s218
    %p220 = scmp.eq.s32.totalorder %s20, 0
    %p221 = por %p219, %p220
    %s222 = ssub.s32 %s21, %s33
    %s223 = ssub.s32 %s22, %s29
    %s224 = sor.u32 %s222, %s223
    %p225 = scmp.eq.s32.totalorder %s224, 0
    %s227 = sadd.s32 %s226, 1
    %s228 = scalar_select %p225, %s226, %s227
    %p231 = pneg %p225
    %p232 = scmp.eq.s32.totalorder %s14, 1
    %p233 = por %p231, %p232
    %p234 = scmp.ne.s32.totalorder %s226, %s229
    %p235 = scmp.eq.s32.totalorder %s14, 0
    %p236 = por %p234, %p235
    %p237 = scmp.ne.s32.totalorder %s226, %s229
    %p238 = scmp.eq.s32.totalorder %s19, 1
    %p239 = por %p237, %p238
    %p240 = scmp.ne.s32.totalorder %s229, %s230
    %p241 = scmp.eq.s32.totalorder %s19, 0
    %p242 = por %p240, %p241
    %p243 = scmp.ne.s32.totalorder %s229, %s230
    %p244 = scmp.eq.s32.totalorder %s20, 1
    %p245 = por %p243, %p244
    %p247 = scmp.ne.s32.totalorder %s230, %s246
    %p248 = scmp.eq.s32.totalorder %s20, 0
    %p249 = por %p247, %p248
    %p250 = scmp.le.s32.totalorder 1, %s14
    %p251 = scmp.lt.s32.totalorder %s14, 3
    %p252 = pnand %p250, %p251
    %p253 = pneg %p252
    // Predicated region
    $region9: #{llama_rotary_forward.1} parent=5 // pred_check
      _
    $region10: #{llama_rotary_forward.1} parent=5 // pred_check_branch
      %255 = sbr.rel (%p252) target = $region12
    $region11: #{llama_rotary_forward.1} parent=5 // pred_region
      %s256 = ssub.s32 %s14, 1
      // Predicated region
      $region13: #{llama_rotary_forward.1} parent=11 // pred_check
        %p257 = pneg %p108
      $region14: #{llama_rotary_forward.1} parent=11 // pred_check_branch
        %259 = sbr.rel (%p257) target = $region16
      $region15: #{llama_rotary_forward.1} parent=11 // pred_region
        %s260 = smul.u32 2, %s24
        %p261 = scmp.lt.s32.totalorder %s260, 1
        %s262 = scalar_select %p261, %s260, 1
        %s263 = smul.addr %s262, 4
        %s264 = smul.addr %s263, 8
        %s265 = scalar_lea.vmem %s2, %s264
        %s266 = smul.u32 2, %s24
      $region16: #{llama_rotary_forward.1} parent=11 // pred_fallthru
        _
      // Predicated region
      $region17: #{llama_rotary_forward.1} parent=11 // pred_check
        %p267 = pneg %p134
      $region18: #{llama_rotary_forward.1} parent=11 // pred_check_branch
        %269 = sbr.rel (%p267) target = $region20
      $region19: #{llama_rotary_forward.1} parent=11 // pred_region
        %s270 = smul.u32 2, %s24
        %p271 = scmp.lt.s32.totalorder %s270, 1
        %s272 = scalar_select %p271, %s270, 1
        %s273 = smul.addr %s272, 4
        %s274 = smul.addr %s273, 8
        %s275 = scalar_lea.vmem %s3, %s274
        %s276 = smul.u32 2, %s24
      $region20: #{llama_rotary_forward.1} parent=11 // pred_fallthru
        _
      // Predicated region
      $region21: #{llama_rotary_forward.1} parent=11 // pred_check
        %p277 = pneg %p160
      $region22: #{llama_rotary_forward.1} parent=11 // pred_check_branch
        %279 = sbr.rel (%p277) target = $region24
      $region23: #{llama_rotary_forward.1} parent=11 // pred_region
        %s280 = smul.u32 2, %s24
        %p281 = scmp.lt.s32.totalorder %s280, 1
        %s282 = scalar_select %p281, %s280, 1
        %s283 = smul.addr %s282, 8
        %s284 = scalar_lea.vmem %s4, %s283
        %s285 = smul.u32 2, %s24
      $region24: #{llama_rotary_forward.1} parent=11 // pred_fallthru
        _
      // Predicated region
      $region25: #{llama_rotary_forward.1} parent=11 // pred_check
        %p286 = pneg %p186
      $region26: #{llama_rotary_forward.1} parent=11 // pred_check_branch
        %288 = sbr.rel (%p286) target = $region28
      $region27: #{llama_rotary_forward.1} parent=11 // pred_region
        %s289 = smul.u32 2, %s24
        %p290 = scmp.lt.s32.totalorder %s289, 1
        %s291 = scalar_select %p290, %s289, 1
        %s292 = smul.addr %s291, 8
        %s293 = scalar_lea.vmem %s5, %s292
        %s294 = smul.u32 2, %s24
      $region28: #{llama_rotary_forward.1} parent=11 // pred_fallthru
        _
    $region12: #{llama_rotary_forward.1} parent=5 // pred_fallthru
      _
    %p295 = scmp.lt.s32.totalorder %s14, 2
    // Predicated region
    $region29: #{llama_rotary_forward.1} parent=5 // pred_check
      %p296 = pneg %p295
    $region30: #{llama_rotary_forward.1} parent=5 // pred_check_branch
      %298 = sbr.rel (%p296) target = $region32
    $region31: #{llama_rotary_forward.1} parent=5 // pred_region
      // Predicated region
      $region33: #{llama_rotary_forward.1} parent=31 // pred_check
        %p299 = pneg %p48
      $region34: #{llama_rotary_forward.1} parent=31 // pred_check_branch
        %301 = sbr.rel (%p299) target = $region36
      $region35: #{llama_rotary_forward.1} parent=31 // pred_region
        %s302 = smul.u32 2, %s22
        %p303 = scmp.lt.s32.totalorder %s21, 1
        %s304 = scalar_select %p303, %s21, 1
        %p305 = scmp.lt.s32.totalorder %s302, 1
        %s306 = scalar_select %p305, %s302, 1
        %s307 = smul.addr %s306, 4
        %s308 = smul.addr %s304, 8
        %s309 = sadd.s32 %s307, %s308
        %s310 = smul.addr %s309, 8
        %s311 = scalar_lea.vmem %s0, %s310
        %s312 = smul.u32 2, %s22
      $region36: #{llama_rotary_forward.1} parent=31 // pred_fallthru
        _
      // Predicated region
      $region37: #{llama_rotary_forward.1} parent=31 // pred_check
        %p313 = pneg %p76
      $region38: #{llama_rotary_forward.1} parent=31 // pred_check_branch
        %315 = sbr.rel (%p313) target = $region40
      $region39: #{llama_rotary_forward.1} parent=31 // pred_region
        %s316 = smul.u32 2, %s22
        %p317 = scmp.lt.s32.totalorder %s21, 1
        %s318 = scalar_select %p317, %s21, 1
        %p319 = scmp.lt.s32.totalorder %s316, 1
        %s320 = scalar_select %p319, %s316, 1
        %s321 = smul.addr %s318, 2
        %s322 = sadd.s32 %s320, %s321
        %s323 = smul.addr %s322, 8
        %s324 = scalar_lea.vmem %s1, %s323
        %s325 = smul.u32 2, %s22
      $region40: #{llama_rotary_forward.1} parent=31 // pred_fallthru
        _
    $region32: #{llama_rotary_forward.1} parent=5 // pred_fallthru
      _
    %p326 = scmp.le.s32.totalorder 1, %s14
    %p327 = scmp.lt.s32.totalorder %s14, 3
    %p328 = pnand %p326, %p327
    %p329 = pneg %p328
    // Predicated region
    $region41: #{llama_rotary_forward.1} parent=5 // pred_check
      _
    $region42: #{llama_rotary_forward.1} parent=5 // pred_check_branch
      %331 = sbr.rel (%p328) target = $region44
    $region43: #{llama_rotary_forward.1} parent=5 // pred_region
      %s332 = ssub.s32 %s14, 1
      %s333 = smul.u32 2, %s24
      %p334 = scmp.lt.s32.totalorder %s23, 1
      %s335 = scalar_select %p334, %s23, 1
      %p336 = scmp.lt.s32.totalorder %s333, 1
      %s337 = scalar_select %p336, %s333, 1
      %s338 = smul.addr %s337, 4
      %s339 = smul.addr %s335, 8
      %s340 = sadd.s32 %s338, %s339
      %s341 = smul.addr %s340, 8
      %s342 = scalar_lea.vmem %s0, %s341
      %p343 = pneg %p54
      %p344 = pneg %p51
      %s345 = smul.u32 2, %s24
      %p346 = scmp.lt.s32.totalorder %s23, 1
      %s347 = scalar_select %p346, %s23, 1
      %p348 = scmp.lt.s32.totalorder %s345, 1
      %s349 = scalar_select %p348, %s345, 1
      %s350 = smul.addr %s347, 2
      %s351 = sadd.s32 %s349, %s350
      %s352 = smul.addr %s351, 8
      %s353 = scalar_lea.vmem %s1, %s352
      %p354 = pneg %p82
      %p355 = pneg %p79
      %s356 = smul.u32 2, %s24
      %p357 = scmp.lt.s32.totalorder %s356, 1
      %s358 = scalar_select %p357, %s356, 1
      %s359 = smul.addr %s358, 4
      %s360 = smul.addr %s359, 8
      %s361 = scalar_lea.vmem %s2, %s360
      %p362 = pneg %p108
      %p363 = pneg %p105
      %s364 = smul.u32 2, %s24
      %p365 = scmp.lt.s32.totalorder %s364, 1
      %s366 = scalar_select %p365, %s364, 1
      %s367 = smul.addr %s366, 4
      %s368 = smul.addr %s367, 8
      %s369 = scalar_lea.vmem %s3, %s368
      %p370 = pneg %p134
      %p371 = pneg %p131
      %s372 = smul.u32 2, %s24
      %p373 = scmp.lt.s32.totalorder %s372, 1
      %s374 = scalar_select %p373, %s372, 1
      %s375 = smul.addr %s374, 8
      %s376 = scalar_lea.vmem %s4, %s375
      %p377 = pneg %p160
      %p378 = pneg %p157
      %s379 = smul.u32 2, %s24
      %p380 = scmp.lt.s32.totalorder %s379, 1
      %s381 = scalar_select %p380, %s379, 1
      %s382 = smul.addr %s381, 8
      %s383 = scalar_lea.vmem %s5, %s382
      %p384 = pneg %p186
      %p385 = pneg %p183
      %p386 = pneg %p214
      %p387 = pneg %p211
      %s388 = smul.u32 2, %s24
      %p389 = scmp.lt.s32.totalorder %s23, 1
      %s390 = scalar_select %p389, %s23, 1
      %p391 = scmp.lt.s32.totalorder %s388, 1
      %s392 = scalar_select %p391, %s388, 1
      %s393 = smul.addr %s392, 4
      %s394 = smul.addr %s390, 8
      %s395 = sadd.s32 %s393, %s394
      %s396 = smul.addr %s395, 8
      %s397 = scalar_lea.vmem %s6, %s396
      %p398 = pneg %p242
      %p399 = pneg %p239
      %s400 = smul.u32 2, %s24
      %p401 = scmp.lt.s32.totalorder %s23, 1
      %s402 = scalar_select %p401, %s23, 1
      %p403 = scmp.lt.s32.totalorder %s400, 1
      %s404 = scalar_select %p403, %s400, 1
      %s405 = smul.addr %s402, 2
      %s406 = sadd.s32 %s404, %s405
      %s407 = smul.addr %s406, 8
      %s408 = scalar_lea.vmem %s7, %s407
      %s409 = smul.u32 2, %s24
      %p410 = scmp.lt.s32.totalorder %s23, 1
      %s411 = scalar_select %p410, %s23, 1
      %p412 = scmp.lt.s32.totalorder %s409, 1
      %s413 = scalar_select %p412, %s409, 1
      %s414 = smul.addr %s413, 4
      %s415 = smul.addr %s411, 8
      %s416 = sadd.s32 %s414, %s415
      %s417 = smul.addr %s416, 8
      %s418 = scalar_lea.vmem %s0, %s417
      %s419 = smul.u32 2, %s24
      %s420 = smul.u32 2, %s24
      %p421 = scmp.lt.s32.totalorder %s23, 1
      %s422 = scalar_select %p421, %s23, 1
      %p423 = scmp.lt.s32.totalorder %s420, 1
      %s424 = scalar_select %p423, %s420, 1
      %s425 = smul.addr %s422, 2
      %s426 = sadd.s32 %s424, %s425
      %s427 = smul.addr %s426, 8
      %s428 = scalar_lea.vmem %s1, %s427
      %s429 = smul.u32 2, %s24
      %s430 = smul.u32 2, %s24
      %p431 = scmp.lt.s32.totalorder %s430, 1
      %s432 = scalar_select %p431, %s430, 1
      %s433 = smul.addr %s432, 4
      %s434 = smul.addr %s433, 8
      %s435 = scalar_lea.vmem %s2, %s434
      %s436 = smul.u32 2, %s24
      %s437 = smul.u32 2, %s24
      %p438 = scmp.lt.s32.totalorder %s437, 1
      %s439 = scalar_select %p438, %s437, 1
      %s440 = smul.addr %s439, 4
      %s441 = smul.addr %s440, 8
      %s442 = scalar_lea.vmem %s3, %s441
      %s443 = smul.u32 2, %s24
      %s444 = smul.u32 2, %s24
      %p445 = scmp.lt.s32.totalorder %s444, 1
      %s446 = scalar_select %p445, %s444, 1
      %s447 = smul.addr %s446, 8
      %s448 = scalar_lea.vmem %s4, %s447
      %s449 = smul.u32 2, %s24
      %s450 = smul.u32 2, %s24
      %p451 = scmp.lt.s32.totalorder %s450, 1
      %s452 = scalar_select %p451, %s450, 1
      %s453 = smul.addr %s452, 8
      %s454 = scalar_lea.vmem %s5, %s453
      %s455 = smul.u32 2, %s24
      %s456 = smul.u32 2, %s24
      %p457 = scmp.lt.s32.totalorder %s23, 1
      %s458 = scalar_select %p457, %s23, 1
      %p459 = scmp.lt.s32.totalorder %s456, 1
      %s460 = scalar_select %p459, %s456, 1
      %s461 = smul.addr %s460, 4
      %s462 = smul.addr %s458, 8
      %s463 = sadd.s32 %s461, %s462
      %s464 = smul.addr %s463, 8
      %s465 = scalar_lea.vmem %s6, %s464
      %s466 = smul.u32 2, %s24
      %s467 = smul.u32 2, %s24
      %p468 = scmp.lt.s32.totalorder %s23, 1
      %s469 = scalar_select %p468, %s23, 1
      %p470 = scmp.lt.s32.totalorder %s467, 1
      %s471 = scalar_select %p470, %s467, 1
      %s472 = smul.addr %s469, 2
      %s473 = sadd.s32 %s471, %s472
      %s474 = smul.addr %s473, 8
      %s475 = scalar_lea.vmem %s7, %s474
      %s476 = smul.u32 2, %s24
      %v477 = vld [vmem:[%s418] sm:$0xff]
      %v478 = vld [vmem:[%s418 + $0x8] sm:$0xff]
      %v479 = vld [vmem:[%s418 + $0x10] sm:$0xff]
      %v480 = vld [vmem:[%s418 + $0x18] sm:$0xff]
      %v481 = vld [vmem:[%s418 + $0x20] sm:$0xff]
      %v482 = vld [vmem:[%s418 + $0x28] sm:$0xff]
      %v483 = vld [vmem:[%s418 + $0x30] sm:$0xff]
      %v484 = vld [vmem:[%s418 + $0x38] sm:$0xff]
      %v485 = vlaneseq
      %v486 = vand.u32 %v485, 127
      %v487 = vadd.s32 %v486, 128
      %v488 = vadd.s32 %v486, 256
      %v489 = vadd.s32 %v486, 384
      %v490 = vand.u32 %v486, 1
      %v491 = vand.u32 %v487, 1
      %v492 = vand.u32 %v488, 1
      %v493 = vand.u32 %v489, 1
      %vm494 = vcmp.eq.s32.totalorder %v490, 0
      %vm495 = vcmp.eq.s32.totalorder %v491, 0
      %vm496 = vcmp.eq.s32.totalorder %v492, 0
      %vm497 = vcmp.eq.s32.totalorder %v493, 0
      %498 = vrot.lane.b32.xlu0 %v477, 127
      %v499 = vpop.permute.xlu0 %498
      %500 = vrot.lane.b32.xlu0 %v481, 127
      %v501 = vpop.permute.xlu0 %500
      %502 = vrot.lane.b32.xlu0 %v478, 127
      %v503 = vpop.permute.xlu0 %502
      %504 = vrot.lane.b32.xlu0 %v482, 127
      %v505 = vpop.permute.xlu0 %504
      %506 = vrot.lane.b32.xlu0 %v479, 127
      %v507 = vpop.permute.xlu0 %506
      %508 = vrot.lane.b32.xlu0 %v483, 127
      %v509 = vpop.permute.xlu0 %508
      %510 = vrot.lane.b32.xlu0 %v480, 127
      %v511 = vpop.permute.xlu0 %510
      %512 = vrot.lane.b32.xlu0 %v484, 127
      %v513 = vpop.permute.xlu0 %512
      %vm514 = vcmp.lt.s32.totalorder %v486, 127
      %v515 = vsel %vm514, %v507, %v511
      %v516 = vsel %vm514, %v509, %v513
      %v517 = vsel %vm514, %v503, %v507
      %v518 = vsel %vm514, %v505, %v509
      %v519 = vsel %vm514, %v499, %v503
      %v520 = vsel %vm514, %v501, %v505
      %v521 = vsel %vm514, %v511, %v499
      %v522 = vsel %vm514, %v513, %v501
      %523 = vrot.lane.b32.xlu0 %v477, 1
      %v524 = vpop.permute.xlu0 %523
      %525 = vrot.lane.b32.xlu0 %v481, 1
      %v526 = vpop.permute.xlu0 %525
      %527 = vrot.lane.b32.xlu0 %v478, 1
      %v528 = vpop.permute.xlu0 %527
      %529 = vrot.lane.b32.xlu0 %v482, 1
      %v530 = vpop.permute.xlu0 %529
      %531 = vrot.lane.b32.xlu0 %v479, 1
      %v532 = vpop.permute.xlu0 %531
      %533 = vrot.lane.b32.xlu0 %v483, 1
      %v534 = vpop.permute.xlu0 %533
      %535 = vrot.lane.b32.xlu0 %v480, 1
      %v536 = vpop.permute.xlu0 %535
      %537 = vrot.lane.b32.xlu0 %v484, 1
      %v538 = vpop.permute.xlu0 %537
      %vm539 = vcmp.lt.s32.totalorder %v486, 1
      %v540 = vsel %vm539, %v532, %v536
      %v541 = vsel %vm539, %v534, %v538
      %v542 = vsel %vm539, %v528, %v532
      %v543 = vsel %vm539, %v530, %v534
      %v544 = vsel %vm539, %v524, %v528
      %v545 = vsel %vm539, %v526, %v530
      %v546 = vsel %vm539, %v536, %v524
      %v547 = vsel %vm539, %v538, %v526
      %v548 = vsel %vm494, %v519, %v546
      %v549 = vsel %vm495, %v517, %v544
      %v550 = vsel %vm496, %v515, %v542
      %v551 = vsel %vm497, %v521, %v540
      %v552 = vsel %vm494, %v520, %v547
      %v553 = vsel %vm495, %v518, %v545
      %v554 = vsel %vm496, %v516, %v543
      %v555 = vsel %vm497, %v522, %v541
      %v556 = vld [vmem:[%s435] sm:$0xff]
      %v557 = vld [vmem:[%s435 + $0x8] sm:$0xff]
      %v558 = vld [vmem:[%s435 + $0x10] sm:$0xff]
      %v559 = vld [vmem:[%s435 + $0x18] sm:$0xff]
      %v560 = vld [vmem:[%s435 + $0x20] sm:$0xff]
      %v561 = vld [vmem:[%s435 + $0x28] sm:$0xff]
      %v562 = vld [vmem:[%s435 + $0x30] sm:$0xff]
      %v563 = vld [vmem:[%s435 + $0x38] sm:$0xff]
      %v564 = vmul.f32 %v477, %v556
      %v565 = vmul.f32 %v478, %v557
      %v566 = vmul.f32 %v479, %v558
      %v567 = vmul.f32 %v480, %v559
      %v568 = vmul.f32 %v481, %v560
      %v569 = vmul.f32 %v482, %v561
      %v570 = vmul.f32 %v483, %v562
      %v571 = vmul.f32 %v484, %v563
      %v572 = vld [vmem:[%s442] sm:$0xff]
      %v573 = vld [vmem:[%s442 + $0x8] sm:$0xff]
      %v574 = vld [vmem:[%s442 + $0x10] sm:$0xff]
      %v575 = vld [vmem:[%s442 + $0x18] sm:$0xff]
      %v576 = vld [vmem:[%s442 + $0x20] sm:$0xff]
      %v577 = vld [vmem:[%s442 + $0x28] sm:$0xff]
      %v578 = vld [vmem:[%s442 + $0x30] sm:$0xff]
      %v579 = vld [vmem:[%s442 + $0x38] sm:$0xff]
      %v580 = vmul.f32 %v548, %v572
      %v581 = vmul.f32 %v549, %v573
      %v582 = vmul.f32 %v550, %v574
      %v583 = vmul.f32 %v551, %v575
      %v584 = vmul.f32 %v552, %v576
      %v585 = vmul.f32 %v553, %v577
      %v586 = vmul.f32 %v554, %v578
      %v587 = vmul.f32 %v555, %v579
      %v588 = vadd.f32 %v564, %v580
      %v589 = vadd.f32 %v565, %v581
      %v590 = vadd.f32 %v566, %v582
      %v591 = vadd.f32 %v567, %v583
      %v592 = vadd.f32 %v568, %v584
      %v593 = vadd.f32 %v569, %v585
      %v594 = vadd.f32 %v570, %v586
      %v595 = vadd.f32 %v571, %v587
      %596 = vst [vmem:[%s465] sm:$0xff] %v588
      %597 = vst [vmem:[%s465 + $0x8] sm:$0xff] %v589
      %598 = vst [vmem:[%s465 + $0x10] sm:$0xff] %v590
      %599 = vst [vmem:[%s465 + $0x18] sm:$0xff] %v591
      %600 = vst [vmem:[%s465 + $0x20] sm:$0xff] %v592
      %601 = vst [vmem:[%s465 + $0x28] sm:$0xff] %v593
      %602 = vst [vmem:[%s465 + $0x30] sm:$0xff] %v594
      %603 = vst [vmem:[%s465 + $0x38] sm:$0xff] %v595
      %v604 = vld [vmem:[%s428] sm:$0xff]
      %v605 = vld [vmem:[%s428 + $0x8] sm:$0xff]
      %606 = vrot.lane.b32.xlu0 %v604, 127
      %v607 = vpop.permute.xlu0 %606
      %608 = vrot.lane.b32.xlu0 %v605, 127
      %v609 = vpop.permute.xlu0 %608
      %610 = vrot.lane.b32.xlu0 %v604, 1
      %v611 = vpop.permute.xlu0 %610
      %612 = vrot.lane.b32.xlu0 %v605, 1
      %v613 = vpop.permute.xlu0 %612
      %v614 = vsel %vm494, %v607, %v611
      %v615 = vsel %vm494, %v609, %v613
      %v616 = vld [vmem:[%s448] sm:$0xff]
      %v617 = vld [vmem:[%s448 + $0x8] sm:$0xff]
      %v618 = vmul.f32 %v604, %v616
      %v619 = vmul.f32 %v605, %v617
      %v620 = vld [vmem:[%s454] sm:$0xff]
      %v621 = vld [vmem:[%s454 + $0x8] sm:$0xff]
      %v622 = vmul.f32 %v614, %v620
      %v623 = vmul.f32 %v615, %v621
      %v624 = vadd.f32 %v618, %v622
      %v625 = vadd.f32 %v619, %v623
      %626 = vst [vmem:[%s475] sm:$0xff] %v624
      %627 = vst [vmem:[%s475 + $0x8] sm:$0xff] %v625
      %s628 = smul.u32 2, %s24
      %p629 = scmp.lt.s32.totalorder %s23, 1
      %s630 = scalar_select %p629, %s23, 1
      %p631 = scmp.lt.s32.totalorder %s628, 1
      %s632 = scalar_select %p631, %s628, 1
      %s633 = smul.addr %s632, 4
      %s634 = smul.addr %s630, 8
      %s635 = sadd.s32 %s633, %s634
      %s636 = smul.addr %s635, 8
      %s637 = scalar_lea.vmem %s6, %s636
      %s638 = smul.u32 2, %s24
      %p639 = scmp.lt.s32.totalorder %s23, 1
      %s640 = scalar_select %p639, %s23, 1
      %p641 = scmp.lt.s32.totalorder %s638, 1
      %s642 = scalar_select %p641, %s638, 1
      %s643 = smul.addr %s640, 2
      %s644 = sadd.s32 %s642, %s643
      %s645 = smul.addr %s644, 8
      %s646 = scalar_lea.vmem %s7, %s645
      // Predicated region
      $region45: #{llama_rotary_forward.1} parent=43 // pred_check
        %p647 = pneg %p211
      $region46: #{llama_rotary_forward.1} parent=43 // pred_check_branch
        %649 = sbr.rel (%p647) target = $region48
      $region47: #{llama_rotary_forward.1} parent=43 // pred_region
        %s650 = smul.u32 2, %s24
      $region48: #{llama_rotary_forward.1} parent=43 // pred_fallthru
        _
      // Predicated region
      $region49: #{llama_rotary_forward.1} parent=43 // pred_check
        %p651 = pneg %p239
      $region50: #{llama_rotary_forward.1} parent=43 // pred_check_branch
        %653 = sbr.rel (%p651) target = $region52
      $region51: #{llama_rotary_forward.1} parent=43 // pred_region
        %s654 = smul.u32 2, %s24
      $region52: #{llama_rotary_forward.1} parent=43 // pred_fallthru
        _
    $region44: #{llama_rotary_forward.1} parent=5 // pred_fallthru
      _
    %p655 = scmp.le.s32.totalorder 2, %s14
    // Predicated region
    $region53: #{llama_rotary_forward.1} parent=5 // pred_check
      %p656 = pneg %p655
    $region54: #{llama_rotary_forward.1} parent=5 // pred_check_branch
      %658 = sbr.rel (%p656) target = $region56
    $region55: #{llama_rotary_forward.1} parent=5 // pred_region
      %s659 = ssub.s32 %s14, 2
      // Predicated region
      $region57: #{llama_rotary_forward.1} parent=55 // pred_check
        %p660 = pneg %p217
      $region58: #{llama_rotary_forward.1} parent=55 // pred_check_branch
        %662 = sbr.rel (%p660) target = $region60
      $region59: #{llama_rotary_forward.1} parent=55 // pred_region
        %s663 = smul.u32 2, %s26
        %p664 = scmp.lt.s32.totalorder %s25, 1
        %s665 = scalar_select %p664, %s25, 1
        %p666 = scmp.lt.s32.totalorder %s663, 1
        %s667 = scalar_select %p666, %s663, 1
        %s668 = smul.addr %s667, 4
        %s669 = smul.addr %s665, 8
        %s670 = sadd.s32 %s668, %s669
        %s671 = smul.addr %s670, 8
        %s672 = scalar_lea.vmem %s6, %s671
      $region60: #{llama_rotary_forward.1} parent=55 // pred_fallthru
        _
      // Predicated region
      $region61: #{llama_rotary_forward.1} parent=55 // pred_check
        %p673 = pneg %p245
      $region62: #{llama_rotary_forward.1} parent=55 // pred_check_branch
        %675 = sbr.rel (%p673) target = $region64
      $region63: #{llama_rotary_forward.1} parent=55 // pred_region
        %s676 = smul.u32 2, %s26
        %p677 = scmp.lt.s32.totalorder %s25, 1
        %s678 = scalar_select %p677, %s25, 1
        %p679 = scmp.lt.s32.totalorder %s676, 1
        %s680 = scalar_select %p679, %s676, 1
        %s681 = smul.addr %s678, 2
        %s682 = sadd.s32 %s680, %s681
        %s683 = smul.addr %s682, 8
        %s684 = scalar_lea.vmem %s7, %s683
      $region64: #{llama_rotary_forward.1} parent=55 // pred_fallthru
        _
    $region56: #{llama_rotary_forward.1} parent=5 // pred_fallthru
      _
  $region6: #{llama_rotary_forward.1} parent=0 // loop_footer
    %s18 = sadd.s32 1, %s14
  $region7: #{llama_rotary_forward.1} parent=0 // loop_footer_branch
    %13 = sbr.rel target = $region3
  $region8: #{llama_rotary_forward.1} parent=0 // loop_exit
    _

</llo_original>
